<compile_context>
chip_gen: v5e
topology: v5e:2x2
jax: 0.10.0
libtpu: 0.0.40
codegen_flags: <defaults>
</compile_context>

<pallas_src>
import functools

import jax
import jax.numpy as jnp
from jax.experimental import pallas as pl
from jax.experimental.pallas import tpu as pltpu


def _round_up(x: int, m: int) -> int:
    return ((x + m - 1) // m) * m


def _pad_and_tile(dim: int, base: int, max_tile: int):
    """Pad `dim` up so it is divisible by a `base`-aligned tile <= max_tile."""
    d0 = _round_up(dim, base)
    tile = min(max_tile, d0)
    return _round_up(dim, tile), tile


# Generation-agnostic tile caps: lane-dense (multiples of 128), big enough to keep
# the MXU busy, small enough for v7x's 64 MiB VMEM.
# TODO(synk): per-generation tile selection (v5e prefers 128-wide M/N tiles).
_TM_MAX = 256   # batch (M) tile
_TN_MAX = 256   # output-feature (N) tile  (lane-dense)
_TK_MAX = 512   # reduction (K) tile


def _matmul_relu_dropout_body(x_ref, w_ref, b_ref, bits_ref, o_ref, acc_ref, *, p):
    """One (i, j, k) grid step: accumulate x_tile @ w_tile; epilogue at last k."""
    k = pl.program_id(2)

    @pl.when(k == 0)
    def _init():
        # Fold the bias into the accumulator init: (1, tn) -> (tm, tn).
        acc_ref[...] = jnp.broadcast_to(b_ref[...], acc_ref.shape).astype(jnp.float32)

    acc_ref[...] += jnp.dot(x_ref[...], w_ref[...],
                            preferred_element_type=jnp.float32)

    @pl.when(k == pl.num_programs(2) - 1)
    def _finish():
        y = jnp.maximum(acc_ref[...], 0.0)          # ReLU
        if bits_ref is not None:                    # inverted dropout (training)
            thr = jnp.uint32(min(int(round(p * 2.0 ** 32)), 2 ** 32 - 1))
            keep = bits_ref[...] >= thr             # P(keep) = 1 - p, exact int compare
            y = jnp.where(keep, y * (1.0 / (1.0 - p)), 0.0)
        o_ref[...] = y.astype(o_ref.dtype)


def _make_kernel(p: float, use_dropout: bool):
    if use_dropout:
        def kernel(x_ref, w_ref, b_ref, bits_ref, o_ref, acc_ref):
            _matmul_relu_dropout_body(x_ref, w_ref, b_ref, bits_ref, o_ref, acc_ref, p=p)
    else:
        def kernel(x_ref, w_ref, b_ref, o_ref, acc_ref):
            _matmul_relu_dropout_body(x_ref, w_ref, b_ref, None, o_ref, acc_ref, p=p)
    return kernel


def prepare_linear_block_params(weight, bias, dtype=jnp.float32):
    """Hoist weight transpose / padding / casts out of the per-call path.

    weight: (Fout, Fin) in PyTorch nn.Linear layout; bias: (Fout,).
    Returns (w_t_padded, bias_padded) with 128-aligned padded dims.
    """
    Fout, Fin = weight.shape
    K_pad, _ = _pad_and_tile(Fin, 128, _TK_MAX)
    N_pad, _ = _pad_and_tile(Fout, 128, _TN_MAX)
    w_t = jnp.zeros((K_pad, N_pad), dtype).at[:Fin, :Fout].set(
        jnp.asarray(weight, dtype).T)
    b2 = jnp.zeros((1, N_pad), dtype).at[:, :Fout].set(jnp.asarray(bias, dtype))
    return w_t, b2


@functools.partial(jax.jit, static_argnames=("fout", "p", "training"))
def linear_block_forward(x, w_t, b2, *, fout, p=0.5, training=False, dropout_key=None):
    """x: (B, Fin). w_t/b2 from prepare_linear_block_params. Returns (B, fout)."""
    B, Fin = x.shape
    K_pad, N_pad = w_t.shape

    tm = min(_TM_MAX, _round_up(B, 8))
    M_pad = _round_up(B, tm)
    tn = min(_TN_MAX, N_pad)
    tk = min(_TK_MAX, K_pad)

    # Zero-pad x to the tiled (M_pad, K_pad) shape (zero K-padding is exact).
    x_p = jnp.zeros((M_pad, K_pad), w_t.dtype).at[:B, :Fin].set(x.astype(w_t.dtype))

    use_dropout = bool(training) and float(p) > 0.0
    grid = (M_pad // tm, N_pad // tn, K_pad // tk)

    in_specs = [
        pl.BlockSpec((tm, tk), lambda i, j, k: (i, k)),   # x tile
        pl.BlockSpec((tk, tn), lambda i, j, k: (k, j)),   # W^T tile
        pl.BlockSpec((1, tn), lambda i, j, k: (0, j)),    # bias tile
    ]
    args = [x_p, w_t, b2]
    if use_dropout:
        if dropout_key is None:
            dropout_key = jax.random.PRNGKey(0)
        # Random bits generated outside the kernel (works on TPU and in
        # interpret mode); one u32 per output element, tiled like the output.
        bits = jax.random.bits(dropout_key, (M_pad, N_pad), dtype=jnp.uint32)
        in_specs.append(pl.BlockSpec((tm, tn), lambda i, j, k: (i, j)))
        args.append(bits)

    # VMEM budget for the chosen tiles (double-buffered pipelined operands + acc),
    # with ~2x headroom; capped to stay inside v7x's 64 MiB physical VMEM.
    itemsize = jnp.dtype(w_t.dtype).itemsize
    est = 2 * (tm * tk + tk * tn + tn + tm * tn
               + (tm * tn if use_dropout else 0)) * itemsize
    est += tm * tn * 4  # f32 accumulator scratch
    vmem_limit = int(min(max(2 * est, 32 * 1024 * 1024), 48 * 1024 * 1024))

    out = pl.pallas_call(
        _make_kernel(float(p), use_dropout),
        out_shape=jax.ShapeDtypeStruct((M_pad, N_pad), x.dtype),
        grid=grid,
        in_specs=in_specs,
        out_specs=pl.BlockSpec((tm, tn), lambda i, j, k: (i, j)),
        scratch_shapes=[pltpu.VMEM((tm, tn), jnp.float32)],
        compiler_params=pltpu.CompilerParams(
            dimension_semantics=("parallel", "parallel", "arbitrary"),
            vmem_limit_bytes=vmem_limit,
        ),
    )(*args)

    return out[:B, :fout]


if __name__ == "__main__":
    # Small shapes consistent with LinearBlock(input_size, output_size, dropout).
    batch, input_size, output_size, dropout_p = 8, 32, 64, 0.2

    key = jax.random.PRNGKey(0)
    kx, kw, kb, kd = jax.random.split(key, 4)

    x = jax.random.normal(kx, (batch, input_size), dtype=jnp.float32)

    # Deterministic init mimicking nn.Linear default: U(-1/sqrt(Fin), 1/sqrt(Fin)).
    bound = 1.0 / (input_size ** 0.5)
    weight = jax.random.uniform(kw, (output_size, input_size),
                                minval=-bound, maxval=bound, dtype=jnp.float32)
    bias = jax.random.uniform(kb, (output_size,),
                              minval=-bound, maxval=bound, dtype=jnp.float32)

    # Params prepared once (transpose / pad / cast hoisted out of forward).
    w_t, b2 = prepare_linear_block_params(weight, bias)

    # Eval-mode forward (dropout = identity) — matches module.eval() semantics.
    out_eval = linear_block_forward(x, w_t, b2, fout=output_size,
                                    p=dropout_p, training=False)
    out_eval = jax.block_until_ready(out_eval)

    ref = jnp.maximum(x @ weight.T + bias, 0.0)
    assert out_eval.shape == (batch, output_size)
    assert jnp.allclose(out_eval, ref, atol=1e-5, rtol=1e-5), "eval mismatch vs reference"

    # Training-mode forward exercises the in-kernel dropout epilogue.
    out_train = linear_block_forward(x, w_t, b2, fout=output_size,
                                     p=dropout_p, training=True, dropout_key=kd)
    out_train = jax.block_until_ready(out_train)
    assert out_train.shape == (batch, output_size)
    scale = 1.0 / (1.0 - dropout_p)
    ok = jnp.isclose(out_train, 0.0, atol=1e-6) | jnp.isclose(
        out_train, ref * scale, atol=1e-4, rtol=1e-4)
    assert bool(jnp.all(ok)), "training-mode dropout output inconsistent"

    print("KERNEL_OK")
</pallas_src>

<mosaic_0001>
module attributes {stable_mosaic.version = 11 : i64} {
  func.func @kernel(%arg0: i32, %arg1: i32, %arg2: i32, %arg3: memref<8x128xf32, #tpu.memory_space<vmem>>, %arg4: memref<128x128xf32, #tpu.memory_space<vmem>>, %arg5: memref<1x128xf32, #tpu.memory_space<vmem>>, %arg6: memref<8x128xf32, #tpu.memory_space<vmem>>, %arg7: memref<8x128xf32, #tpu.memory_space<vmem>>) attributes {dimension_semantics = [#tpu.dimension_semantics<parallel>, #tpu.dimension_semantics<parallel>, #tpu.dimension_semantics<arbitrary>], iteration_bounds = array<i64: 1, 1, 1>, scalar_prefetch = 0 : i64, scratch_operands = 1 : i64, tpu.core_type = #tpu.core_type<tc>, window_params = [{transform_indices = @transform_0, window_bounds = array<i64: 8, 128>}, {transform_indices = @transform_1, window_bounds = array<i64: 128, 128>}, {transform_indices = @transform_2, window_bounds = array<i64: 1, 128>}, {transform_indices = @transform_3, window_bounds = array<i64: 8, 128>}]} {
    %c0_i32 = arith.constant 0 : i32
    %0 = arith.cmpi eq, %arg2, %c0_i32 : i32
    %1 = arith.extui %0 : i1 to i32
    %c0_i32_0 = arith.constant 0 : i32
    %2 = arith.cmpi ne, %1, %c0_i32_0 : i32
    scf.if %2 {
      %c0_10 = arith.constant 0 : index
      %c0_11 = arith.constant 0 : index
      %12 = vector.load %arg5[%c0_10, %c0_11] : memref<1x128xf32, #tpu.memory_space<vmem>>, vector<1x128xf32>
      %13 = vector.shape_cast %12 : vector<1x128xf32> to vector<1x128xf32>
      %14 = vector.broadcast %13 : vector<1x128xf32> to vector<8x128xf32>
      %c0_12 = arith.constant 0 : index
      %c0_13 = arith.constant 0 : index
      %15 = vector.load %arg7[%c0_12, %c0_13] : memref<8x128xf32, #tpu.memory_space<vmem>>, vector<8x128xf32>
      tpu.vector_store %arg7[%c0_12, %c0_13], %14 {strides = array<i32>} : memref<8x128xf32, #tpu.memory_space<vmem>>, vector<8x128xf32>,
    } else {
    }
    %c0 = arith.constant 0 : index
    %c0_1 = arith.constant 0 : index
    %3 = vector.load %arg7[%c0, %c0_1] : memref<8x128xf32, #tpu.memory_space<vmem>>, vector<8x128xf32>
    %c0_2 = arith.constant 0 : index
    %c0_3 = arith.constant 0 : index
    %4 = vector.load %arg3[%c0_2, %c0_3] : memref<8x128xf32, #tpu.memory_space<vmem>>, vector<8x128xf32>
    %c0_4 = arith.constant 0 : index
    %c0_5 = arith.constant 0 : index
    %5 = vector.load %arg4[%c0_4, %c0_5] : memref<128x128xf32, #tpu.memory_space<vmem>>, vector<128x128xf32>
    %cst = arith.constant dense<0.000000e+00> : vector<8x128xf32>
    %6 = tpu.matmul %4, %5, %cst {dimension_numbers = #tpu.dot_dimension_numbers<[1], [0], [0], [1], [0, 0, 1, 1], [], []>} : vector<8x128xf32>, vector<128x128xf32>, vector<8x128xf32> -> vector<8x128xf32>
    %7 = arith.addf %3, %6 : vector<8x128xf32>
    %c0_6 = arith.constant 0 : index
    %c0_7 = arith.constant 0 : index
    %8 = vector.load %arg7[%c0_6, %c0_7] : memref<8x128xf32, #tpu.memory_space<vmem>>, vector<8x128xf32>
    tpu.vector_store %arg7[%c0_6, %c0_7], %7 {strides = array<i32>} : memref<8x128xf32, #tpu.memory_space<vmem>>, vector<8x128xf32>,
    %c0_i32_8 = arith.constant 0 : i32
    %9 = arith.cmpi eq, %arg2, %c0_i32_8 : i32
    %10 = arith.extui %9 : i1 to i32
    %c0_i32_9 = arith.constant 0 : i32
    %11 = arith.cmpi ne, %10, %c0_i32_9 : i32
    scf.if %11 {
      %c0_10 = arith.constant 0 : index
      %c0_11 = arith.constant 0 : index
      %12 = vector.load %arg7[%c0_10, %c0_11] : memref<8x128xf32, #tpu.memory_space<vmem>>, vector<8x128xf32>
      %cst_12 = arith.constant 0.000000e+00 : f32
      %13 = vector.broadcast %cst_12 : f32 to vector<8x128xf32>
      %14 = arith.maximumf %12, %13 : vector<8x128xf32>
      %c0_13 = arith.constant 0 : index
      %c0_14 = arith.constant 0 : index
      %15 = vector.load %arg6[%c0_13, %c0_14] : memref<8x128xf32, #tpu.memory_space<vmem>>, vector<8x128xf32>
      tpu.vector_store %arg6[%c0_13, %c0_14], %14 {strides = array<i32>} : memref<8x128xf32, #tpu.memory_space<vmem>>, vector<8x128xf32>,
    } else {
    }
    return
  }
  func.func @transform_0(%arg0: i32, %arg1: i32, %arg2: i32) -> (i32, i32) {
    %c0_i32 = arith.constant 0 : i32
    return %arg0, %arg2 : i32, i32
  }
  func.func @transform_1(%arg0: i32, %arg1: i32, %arg2: i32) -> (i32, i32) {
    %c0_i32 = arith.constant 0 : i32
    return %arg2, %arg1 : i32, i32
  }
  func.func @transform_2(%arg0: i32, %arg1: i32, %arg2: i32) -> (i32, i32) {
    %c0_i32 = arith.constant 0 : i32
    %c0_i32_0 = arith.constant 0 : i32
    return %c0_i32, %arg1 : i32, i32
  }
  func.func @transform_3(%arg0: i32, %arg1: i32, %arg2: i32) -> (i32, i32) {
    %c0_i32 = arith.constant 0 : i32
    return %arg0, %arg1 : i32, i32
  }
}

</mosaic_0001>

<llo_original>
// kernel: linear_block_forward.1
$region0: #{linear_block_forward.1}
  #allocation0 [shape = 'u32[]', space=smem, size = 0x4, offset = 0x4, fixed_abs, tag = 'smem constant byte address 0x4 - core index']
  #allocation1 [shape = 'u32[72,128]{1,0:T(1,128)}', space=vmem, size = 0x9000, scoped, tag = 'internal scratch']
  #allocation2 [shape = 'f32[8,128]{1,0:T(8,128)}', space=vmem, size = 0x1000, scoped, tag = 'scratch operand']
  %s0 = inlined_call_operand.vmem [shape: f32[8,128], index: 0, kind: input, shape index: {}]
  %s1 = inlined_call_operand.hbm [shape: f32[128,128], index: 1, kind: input, shape index: {}]
  %s2 = inlined_call_operand.vmem [shape: f32[1,128], index: 2, kind: input, shape index: {}]
  %s3 = inlined_call_operand.hbm [shape: f32[8,128], index: 3, kind: output, shape index: {}]
  %s4 = sld [smem:[#allocation0]]
  $region34: #{linear_block_forward.1} parent=0
    _
  %s6 = ssub.s32 1, %s4
  %s7 = scalar_select 0, %s6, %s4
  $region1: #{linear_block_forward.1} parent=0
    #allocation3 [shape = 'u8[65536]{0}', space=vmem, size = 0x10000, scoped, tag = 'input window, operand 1, single buffered']
    #allocation4 [shape = 's32[1]{0}', space=sflag, size = 0x4, scoped, tag = 'scoped memory for linear_block_forward.1']
    #allocation5 [shape = 's32[1]{0}', space=sflag, size = 0x4, scoped, tag = 'scoped memory for linear_block_forward.1']
    #allocation6 [shape = 'u8[4096]{0}', space=vmem, size = 0x1000, scoped, tag = 'output window, operand 0, single buffered']
    %8 = vsyncpa [#allocation4], 0
    %9 = vsyncpa [#allocation5], 0
    // Predicated region
    $region2: #{linear_block_forward.1} parent=1 // pred_check
      _
    $region3: #{linear_block_forward.1} parent=1 // pred_check_branch
      %11 = sbr.rel (0) target = $region5
    $region4: #{linear_block_forward.1} parent=1 // pred_region
      _
    $region5: #{linear_block_forward.1} parent=1 // pred_fallthru
      _
    // Predicated region
    $region6: #{linear_block_forward.1} parent=1 // pred_check
      _
    $region7: #{linear_block_forward.1} parent=1 // pred_check_branch
      %13 = sbr.rel (0) target = $region9
    $region8: #{linear_block_forward.1} parent=1 // pred_region
      %15 = vsyncadd [#allocation4], 0
      %s16 = sshll.u32 %s1, 4
      %s17 = int_to_ptr.hbm [resolvable:$true] %s16
      %s18 = sshll.u32 [#allocation3], 4
      %s19 = int_to_ptr.vmem [resolvable:$true] %s18
      %24 = dma.hbm_to_vmem [thread:$0]  %s17, 2048, %s19, [#allocation4], 128, 128, 8
    $region9: #{linear_block_forward.1} parent=1 // pred_fallthru
      _
    // Predicated region
    $region10: #{linear_block_forward.1} parent=1 // pred_check
      _
    $region11: #{linear_block_forward.1} parent=1 // pred_check_branch
      %26 = sbr.rel (0) target = $region13
    $region12: #{linear_block_forward.1} parent=1 // pred_region
      _
    $region13: #{linear_block_forward.1} parent=1 // pred_fallthru
      _
    // Predicated region
    $region14: #{linear_block_forward.1} parent=1 // pred_check
      _
    $region15: #{linear_block_forward.1} parent=1 // pred_check_branch
      %28 = sbr.rel (0) target = $region17
    $region16: #{linear_block_forward.1} parent=1 // pred_region
      %30 = dma.done [#allocation4], 2048
    $region17: #{linear_block_forward.1} parent=1 // pred_fallthru
      _
    %p31 = scmp.eq.s32.totalorder 0, 0
    // Predicated region
    $region18: #{linear_block_forward.1} parent=1 // pred_check
      %p32 = pneg %p31
    $region19: #{linear_block_forward.1} parent=1 // pred_check_branch
      %34 = sbr.rel (%p32) target = $region21
    $region20: #{linear_block_forward.1} parent=1 // pred_region
      %v35 = vld [vmem:[%s2] sm:$0x1]
      %v37 = vperm.slane %v35, 0
      %39 = vst [vmem:[#allocation2] sm:$0xff] %v37
    $region21: #{linear_block_forward.1} parent=1 // pred_fallthru
      _
    %v40 = vld [vmem:[#allocation2] sm:$0xff]
    %v41 = vld [vmem:[%s0] sm:$0xff]
    %v42 = vld [vmem:[#allocation3] sm:$0xff]
    %v43 = vld [vmem:[#allocation3 + $0x8] sm:$0xff]
    %v44 = vld [vmem:[#allocation3 + $0x10] sm:$0xff]
    %v45 = vld [vmem:[#allocation3 + $0x18] sm:$0xff]
    %v46 = vld [vmem:[#allocation3 + $0x20] sm:$0xff]
    %v47 = vld [vmem:[#allocation3 + $0x28] sm:$0xff]
    %v48 = vld [vmem:[#allocation3 + $0x30] sm:$0xff]
    %v49 = vld [vmem:[#allocation3 + $0x38] sm:$0xff]
    %v50 = vld [vmem:[#allocation3 + $0x40] sm:$0xff]
    %v51 = vld [vmem:[#allocation3 + $0x48] sm:$0xff]
    %v52 = vld [vmem:[#allocation3 + $0x50] sm:$0xff]
    %v53 = vld [vmem:[#allocation3 + $0x58] sm:$0xff]
    %v54 = vld [vmem:[#allocation3 + $0x60] sm:$0xff]
    %v55 = vld [vmem:[#allocation3 + $0x68] sm:$0xff]
    %v56 = vld [vmem:[#allocation3 + $0x70] sm:$0xff]
    %v57 = vld [vmem:[#allocation3 + $0x78] sm:$0xff]
    %58 = vmatpush.msra.mxu0 %v57
    %59 = vmatpush.msra.mxu0 %v56
    %60 = vmatpush.msra.mxu0 %v55
    %61 = vmatpush.msra.mxu0 %v54
    %62 = vmatpush.msra.mxu0 %v53
    %63 = vmatpush.msra.mxu0 %v52
    %64 = vmatpush.msra.mxu0 %v51
    %65 = vmatpush.msra.mxu0 %v50
    %66 = vmatpush.msra.mxu0 %v49
    %67 = vmatpush.msra.mxu0 %v48
    %68 = vmatpush.msra.mxu0 %v47
    %69 = vmatpush.msra.mxu0 %v46
    %70 = vmatpush.msra.mxu0 %v45
    %71 = vmatpush.msra.mxu0 %v44
    %72 = vmatpush.msra.mxu0 %v43
    %73 = vmatpush.msra.mxu0 %v42
    %74 = vmatmul.f32.gmra.mxu0 %v41
    %v75 = vpop.f32.mrf.mxu0
    %v76 = vadd.f32 0.0, %v75
    %77 = vdwg.mxu0
    %v78 = vadd.f32 %v40, %v76
    %79 = vst [vmem:[#allocation2] sm:$0xff] %v78
    // Predicated region
    $region22: #{linear_block_forward.1} parent=1 // pred_check
      %p80 = pneg %p31
    $region23: #{linear_block_forward.1} parent=1 // pred_check_branch
      %82 = sbr.rel (%p80) target = $region25
    $region24: #{linear_block_forward.1} parent=1 // pred_region
      %v83 = vld [vmem:[#allocation2] sm:$0xff]
      %v84 = vmax.f32 %v83, 0.0
      %85 = vst [vmem:[#allocation6] sm:$0xff] %v84
    $region25: #{linear_block_forward.1} parent=1 // pred_fallthru
      _
    // Predicated region
    $region26: #{linear_block_forward.1} parent=1 // pred_check
      _
    $region27: #{linear_block_forward.1} parent=1 // pred_check_branch
      %87 = sbr.rel (0) target = $region29
    $region28: #{linear_block_forward.1} parent=1 // pred_region
      %89 = vsyncadd [#allocation5], 0
      %s91 = sshll.u32 [#allocation6], 4
      %s92 = int_to_ptr.vmem [resolvable:$true] %s91
      %s93 = sshll.u32 %s3, 4
      %s94 = int_to_ptr.hbm [resolvable:$true] %s93
      %96 = dma.vmem_to_hbm [thread:$0]  %s92, 128, %s94, [#allocation5]
    $region29: #{linear_block_forward.1} parent=1 // pred_fallthru
      _
    // Predicated region
    $region30: #{linear_block_forward.1} parent=1 // pred_check
      _
    $region31: #{linear_block_forward.1} parent=1 // pred_check_branch
      %98 = sbr.rel (0) target = $region33
    $region32: #{linear_block_forward.1} parent=1 // pred_region
      %100 = dma.done [#allocation5], 128
    $region33: #{linear_block_forward.1} parent=1 // pred_fallthru
      _
    %101 = vsyncpa [#allocation4], 1
    %102 = vsyncpa [#allocation5], 1

</llo_original>
